<compile_context>
chip_gen: v7x
topology: tpu7x:2x2x1
jax: 0.10.0
libtpu: 0.0.40
codegen_flags: <defaults>
</compile_context>

<pallas_src>
import functools

import jax
import jax.numpy as jnp
from jax.experimental import pallas as pl
from jax.experimental.pallas import tpu as pltpu

P_DROP = 0.25          # actor_p == critic_p == 0.25 in the reference module
_HEAD_LANE_PAD = 128   # lane-dense output slab width (multiple of 128)


# --------------------------------------------------------------------------- kernel
def _fused_actor_critic_kernel(*refs, training, out_dim, fused_widths):
    """One grid step over a batch tile.

    refs = (x, [mask], (w0,b0), (w1,b1), ..., w_head, b_head, out)
    Output lane layout: [alpha | beta | v | zero-pad] -> single unmasked wide store.
    """
    n_layers = len(fused_widths)
    it = iter(refs)
    x_ref = next(it)
    mask_ref = next(it) if training else None
    layer_refs = [next(it) for _ in range(2 * n_layers)]
    wh_ref = next(it)
    bh_ref = next(it)
    out_ref = next(it)

    h = x_ref[...]
    off = 0
    for li, width in enumerate(fused_widths):
        w_ref = layer_refs[2 * li]
        b_ref = layer_refs[2 * li + 1]
        # Actor & critic layer `li` fused into one (block-diagonal) weight: 1 MXU push.
        z = jnp.dot(h.astype(w_ref.dtype), w_ref[...],
                    preferred_element_type=jnp.float32) + b_ref[...]
        h = jnp.maximum(z, 0.0)
        if training:
            # Keep-scale mask (0 or 1/(1-p)) precomputed in the wrapper: one VPU mul.
            h = h * mask_ref[:, off:off + width]
        off += width

    # Fused head: alpha|beta from the actor lanes, v from the critic lanes, one matmul.
    z = jnp.dot(h.astype(wh_ref.dtype), wh_ref[...],
                preferred_element_type=jnp.float32) + bh_ref[...]
    col = jax.lax.broadcasted_iota(jnp.int32, z.shape, 1)
    # softplus(.)+1 only on the alpha/beta lanes; v (and padding) pass through.
    out_ref[...] = jnp.where(col < 2 * out_dim, jax.nn.softplus(z) + 1.0, z)


# ------------------------------------------------------------------ parameter fusion
def _fuse_params(params, param_dtype):
    """Fuse actor+critic parameters into 4 wide weights + 4 biases (+ lane layout)."""
    a, c = params["actor"], params["critic"]
    n_layers = 0
    while f"w{n_layers}" in a:
        n_layers += 1
    out_dim = a["wa"].shape[1]

    def block_diag(wa, wc):
        ra, ca_ = wa.shape
        rc, cc = wc.shape
        top = jnp.concatenate([wa, jnp.zeros((ra, cc), jnp.float32)], axis=1)
        bot = jnp.concatenate([jnp.zeros((rc, ca_), jnp.float32), wc], axis=1)
        return jnp.concatenate([top, bot], axis=0)

    fused = {"out_dim": out_dim}
    widths = []
    for li in range(n_layers):
        if li == 0:
            w = jnp.concatenate([a["w0"], c["w0"]], axis=1)   # both towers share x
        else:
            w = block_diag(a[f"w{li}"], c[f"w{li}"])
        b = jnp.concatenate([a[f"b{li}"], c[f"b{li}"]], axis=1)
        fused[f"w{li}"] = w.astype(param_dtype)
        fused[f"b{li}"] = b.astype(jnp.float32)
        widths.append(int(w.shape[1]))

    last_a = a["wa"].shape[0]
    last_c = c["wv"].shape[0]
    head_in = last_a + last_c
    head_w = max(_HEAD_LANE_PAD, ((2 * out_dim + 1 + 127) // 128) * 128)
    wh = jnp.zeros((head_in, head_w), jnp.float32)
    wh = wh.at[:last_a, 0:out_dim].set(a["wa"])
    wh = wh.at[:last_a, out_dim:2 * out_dim].set(a["wb"])
    wh = wh.at[last_a:, 2 * out_dim:2 * out_dim + 1].set(c["wv"])
    bh = jnp.zeros((1, head_w), jnp.float32)
    bh = bh.at[:, 0:out_dim].set(a["ba"])
    bh = bh.at[:, out_dim:2 * out_dim].set(a["bb"])
    bh = bh.at[:, 2 * out_dim:2 * out_dim + 1].set(c["bv"])

    fused["wh"] = wh.astype(param_dtype)
    fused["bh"] = bh
    fused["widths"] = tuple(widths)
    fused["n_layers"] = n_layers
    return fused


# ------------------------------------------------------------------------ forward
def dropout_actor_critic_forward(x, params, *, training=False, rng_key=None,
                                 tile_b=512, param_dtype=jnp.float32):
    """Returns ((alpha, beta), v) exactly like DropoutActorCritic.forward."""
    B = x.shape[0]
    x2 = jnp.reshape(x, (B, -1)).astype(jnp.float32)
    d_in = x2.shape[1]

    fused = _fuse_params(params, param_dtype)
    out_dim = fused["out_dim"]
    widths = fused["widths"]
    n_layers = fused["n_layers"]
    head_w = fused["wh"].shape[1]

    # ---- batch tiling (pad B up to a multiple of the tile when needed) ----
    if B <= tile_b:
        tb, n_blocks, Bp = B, 1, B
    else:
        tb = tile_b
        n_blocks = pl.cdiv(B, tb)
        Bp = n_blocks * tb
    if Bp != B:
        x2 = jnp.pad(x2, ((0, Bp - B), (0, 0)))

    inputs = [x2]
    in_specs = [pl.BlockSpec((tb, d_in), lambda i: (i, 0))]

    if training:
        if rng_key is None:
            rng_key = jax.random.PRNGKey(0)
        mask_w = sum(widths)
        keep = jax.random.bernoulli(rng_key, 1.0 - P_DROP, (Bp, mask_w))
        mask = keep.astype(jnp.float32) * (1.0 / (1.0 - P_DROP))
        inputs.append(mask)
        in_specs.append(pl.BlockSpec((tb, mask_w), lambda i: (i, 0)))

    flat_params = []
    for li in range(n_layers):
        flat_params += [fused[f"w{li}"], fused[f"b{li}"]]
    flat_params += [fused["wh"], fused["bh"]]
    for p in flat_params:
        # Same block (0,0) every grid step -> weights stay VMEM-resident (no re-DMA).
        in_specs.append(pl.BlockSpec(p.shape, lambda i: (0, 0)))
    inputs += flat_params

    out = pl.pallas_call(
        functools.partial(_fused_actor_critic_kernel, training=training,
                          out_dim=out_dim, fused_widths=widths),
        grid=(n_blocks,),
        in_specs=in_specs,
        out_specs=pl.BlockSpec((tb, head_w), lambda i: (i, 0)),
        out_shape=jax.ShapeDtypeStruct((Bp, head_w), jnp.float32),
        compiler_params=pltpu.CompilerParams(dimension_semantics=("parallel",)),
    )(*inputs)

    alpha = out[:B, 0:out_dim]
    beta = out[:B, out_dim:2 * out_dim]
    v = out[:B, 2 * out_dim:2 * out_dim + 1]
    return (alpha, beta), v


# --------------------------------------------------------------------- init & reference
def init_params(key, state_stack=4, input_dim=11, output_dim=1,
                architecture=(256, 128, 64)):
    """Deterministic init matching torch.nn.Linear default (U(-1/sqrt(fan_in), ..)).
    Weights are stored transposed vs torch, i.e. (fan_in, fan_out)."""
    d_in = state_stack * input_dim
    dims = [d_in] + list(architecture)

    def linear(k, fan_in, fan_out):
        kw, kb = jax.random.split(k)
        bound = 1.0 / (fan_in ** 0.5)
        w = jax.random.uniform(kw, (fan_in, fan_out), jnp.float32, -bound, bound)
        b = jax.random.uniform(kb, (1, fan_out), jnp.float32, -bound, bound)
        return w, b

    keys = iter(jax.random.split(key, 16))
    actor, critic = {}, {}
    for i in range(3):
        actor[f"w{i}"], actor[f"b{i}"] = linear(next(keys), dims[i], dims[i + 1])
    actor["wa"], actor["ba"] = linear(next(keys), dims[-1], output_dim)
    actor["wb"], actor["bb"] = linear(next(keys), dims[-1], output_dim)
    for i in range(3):
        critic[f"w{i}"], critic[f"b{i}"] = linear(next(keys), dims[i], dims[i + 1])
    critic["wv"], critic["bv"] = linear(next(keys), dims[-1], 1)
    return {"actor": actor, "critic": critic}


def _reference_forward(x, params):
    """Pure-JAX eval-mode reference (dropout = identity) for correctness checking."""
    B = x.shape[0]
    h = jnp.reshape(x, (B, -1)).astype(jnp.float32)
    a, c = params["actor"], params["critic"]

    ha = h
    for i in range(3):
        ha = jnp.maximum(ha @ a[f"w{i}"] + a[f"b{i}"], 0.0)
    alpha = jax.nn.softplus(ha @ a["wa"] + a["ba"]) + 1.0
    beta = jax.nn.softplus(ha @ a["wb"] + a["bb"]) + 1.0

    hc = h
    for i in range(3):
        hc = jnp.maximum(hc @ c[f"w{i}"] + c[f"b{i}"], 0.0)
    v = hc @ c["wv"] + c["bv"]
    return (alpha, beta), v


# ------------------------------------------------------------------------------ main
if __name__ == "__main__":
    key = jax.random.PRNGKey(0)
    k_params, k_x, k_x2, k_drop = jax.random.split(key, 4)

    state_stack, input_dim, output_dim = 4, 11, 1
    params = init_params(k_params, state_stack=state_stack, input_dim=input_dim,
                         output_dim=output_dim, architecture=(256, 128, 64))

    # ---- small batch, eval mode, f32 weights: must match the pure-JAX reference ----
    x = jax.random.normal(k_x, (2, state_stack, input_dim), dtype=jnp.float32)
    (alpha, beta), v = dropout_actor_critic_forward(x, params, training=False)
    jax.block_until_ready((alpha, beta, v))
    (alpha_r, beta_r), v_r = _reference_forward(x, params)
    assert alpha.shape == (2, output_dim) and beta.shape == (2, output_dim)
    assert v.shape == (2, 1)
    assert jnp.allclose(alpha, alpha_r, atol=1e-5, rtol=1e-5)
    assert jnp.allclose(beta, beta_r, atol=1e-5, rtol=1e-5)
    assert jnp.allclose(v, v_r, atol=1e-5, rtol=1e-5)
    # Beta-distribution parameters must be > 1 by construction (softplus + 1).
    assert bool(jnp.all(alpha > 1.0)) and bool(jnp.all(beta > 1.0))

    # ---- larger batch exercising the batch grid (tile=8 -> 3 grid steps + padding) ----
    xb = jax.random.normal(k_x2, (20, state_stack, input_dim), dtype=jnp.float32)
    (alpha_b, beta_b), v_b = dropout_actor_critic_forward(xb, params, training=False,
                                                          tile_b=8)
    jax.block_until_ready((alpha_b, beta_b, v_b))
    (alpha_br, beta_br), v_br = _reference_forward(xb, params)
    assert alpha_b.shape == (20, output_dim) and v_b.shape == (20, 1)
    assert jnp.allclose(alpha_b, alpha_br, atol=1e-5, rtol=1e-5)
    assert jnp.allclose(beta_b, beta_br, atol=1e-5, rtol=1e-5)
    assert jnp.allclose(v_b, v_br, atol=1e-5, rtol=1e-5)

    # ---- bf16 weights with f32 accumulation (MXU-native path): loose check ----
    (alpha_h, beta_h), v_h = dropout_actor_critic_forward(
        x, params, training=False, param_dtype=jnp.bfloat16)
    jax.block_until_ready((alpha_h, beta_h, v_h))
    assert jnp.allclose(alpha_h, alpha_r, atol=1e-1, rtol=1e-1)
    assert jnp.allclose(beta_h, beta_r, atol=1e-1, rtol=1e-1)
    assert jnp.allclose(v_h, v_r, atol=1e-1, rtol=1e-1)

    # ---- training mode: inverted dropout (p=0.25) via precomputed keep-scale masks ----
    (alpha_t, beta_t), v_t = dropout_actor_critic_forward(
        x, params, training=True, rng_key=k_drop)
    jax.block_until_ready((alpha_t, beta_t, v_t))
    assert alpha_t.shape == (2, output_dim) and v_t.shape == (2, 1)
    assert bool(jnp.all(jnp.isfinite(alpha_t))) and bool(jnp.all(jnp.isfinite(v_t)))
    assert bool(jnp.all(alpha_t > 1.0)) and bool(jnp.all(beta_t > 1.0))

    print("KERNEL_OK")
</pallas_src>

<mosaic_0001>
module attributes {stable_mosaic.version = 11 : i64} {
  func.func @_fused_actor_critic_kernel(%arg0: i32, %arg1: memref<2x44xf32, #tpu.memory_space<vmem>>, %arg2: memref<44x512xf32, #tpu.memory_space<vmem>>, %arg3: memref<1x512xf32, #tpu.memory_space<vmem>>, %arg4: memref<512x256xf32, #tpu.memory_space<vmem>>, %arg5: memref<1x256xf32, #tpu.memory_space<vmem>>, %arg6: memref<256x128xf32, #tpu.memory_space<vmem>>, %arg7: memref<1x128xf32, #tpu.memory_space<vmem>>, %arg8: memref<128x128xf32, #tpu.memory_space<vmem>>, %arg9: memref<1x128xf32, #tpu.memory_space<vmem>>, %arg10: memref<2x128xf32, #tpu.memory_space<vmem>>) attributes {dimension_semantics = [#tpu.dimension_semantics<parallel>], iteration_bounds = array<i64: 1>, scalar_prefetch = 0 : i64, scratch_operands = 0 : i64, tpu.core_type = #tpu.core_type<tc>, window_params = [{transform_indices = @transform_0, window_bounds = array<i64: 2, 44>}, {pipeline_mode = #tpu.pipeline_mode<synchronous>, transform_indices = @transform_1, window_bounds = array<i64: 44, 512>}, {pipeline_mode = #tpu.pipeline_mode<synchronous>, transform_indices = @transform_2, window_bounds = array<i64: 1, 512>}, {pipeline_mode = #tpu.pipeline_mode<synchronous>, transform_indices = @transform_3, window_bounds = array<i64: 512, 256>}, {pipeline_mode = #tpu.pipeline_mode<synchronous>, transform_indices = @transform_4, window_bounds = array<i64: 1, 256>}, {pipeline_mode = #tpu.pipeline_mode<synchronous>, transform_indices = @transform_5, window_bounds = array<i64: 256, 128>}, {pipeline_mode = #tpu.pipeline_mode<synchronous>, transform_indices = @transform_6, window_bounds = array<i64: 1, 128>}, {pipeline_mode = #tpu.pipeline_mode<synchronous>, transform_indices = @transform_7, window_bounds = array<i64: 128, 128>}, {pipeline_mode = #tpu.pipeline_mode<synchronous>, transform_indices = @transform_8, window_bounds = array<i64: 1, 128>}, {transform_indices = @transform_9, window_bounds = array<i64: 2, 128>}]} {
    %c0 = arith.constant 0 : index
    %c0_0 = arith.constant 0 : index
    %0 = vector.load %arg1[%c0, %c0_0] : memref<2x44xf32, #tpu.memory_space<vmem>>, vector<2x44xf32>
    %c0_1 = arith.constant 0 : index
    %c0_2 = arith.constant 0 : index
    %1 = vector.load %arg2[%c0_1, %c0_2] : memref<44x512xf32, #tpu.memory_space<vmem>>, vector<44x512xf32>
    %cst = arith.constant dense<0.000000e+00> : vector<2x512xf32>
    %2 = tpu.matmul %0, %1, %cst {dimension_numbers = #tpu.dot_dimension_numbers<[1], [0], [0], [1], [0, 0, 1, 1], [], []>} : vector<2x44xf32>, vector<44x512xf32>, vector<2x512xf32> -> vector<2x512xf32>
    %c0_3 = arith.constant 0 : index
    %c0_4 = arith.constant 0 : index
    %3 = vector.load %arg3[%c0_3, %c0_4] : memref<1x512xf32, #tpu.memory_space<vmem>>, vector<1x512xf32>
    %4 = vector.broadcast %3 : vector<1x512xf32> to vector<2x512xf32>
    %5 = arith.addf %2, %4 : vector<2x512xf32>
    %cst_5 = arith.constant 0.000000e+00 : f32
    %6 = vector.broadcast %cst_5 : f32 to vector<2x512xf32>
    %7 = arith.maximumf %5, %6 : vector<2x512xf32>
    %c0_6 = arith.constant 0 : index
    %c0_7 = arith.constant 0 : index
    %8 = vector.load %arg4[%c0_6, %c0_7] : memref<512x256xf32, #tpu.memory_space<vmem>>, vector<512x256xf32>
    %cst_8 = arith.constant dense<0.000000e+00> : vector<2x256xf32>
    %9 = tpu.matmul %7, %8, %cst_8 {dimension_numbers = #tpu.dot_dimension_numbers<[1], [0], [0], [1], [0, 0, 1, 1], [], []>} : vector<2x512xf32>, vector<512x256xf32>, vector<2x256xf32> -> vector<2x256xf32>
    %c0_9 = arith.constant 0 : index
    %c0_10 = arith.constant 0 : index
    %10 = vector.load %arg5[%c0_9, %c0_10] : memref<1x256xf32, #tpu.memory_space<vmem>>, vector<1x256xf32>
    %11 = vector.broadcast %10 : vector<1x256xf32> to vector<2x256xf32>
    %12 = arith.addf %9, %11 : vector<2x256xf32>
    %cst_11 = arith.constant 0.000000e+00 : f32
    %13 = vector.broadcast %cst_11 : f32 to vector<2x256xf32>
    %14 = arith.maximumf %12, %13 : vector<2x256xf32>
    %c0_12 = arith.constant 0 : index
    %c0_13 = arith.constant 0 : index
    %15 = vector.load %arg6[%c0_12, %c0_13] : memref<256x128xf32, #tpu.memory_space<vmem>>, vector<256x128xf32>
    %cst_14 = arith.constant dense<0.000000e+00> : vector<2x128xf32>
    %16 = tpu.matmul %14, %15, %cst_14 {dimension_numbers = #tpu.dot_dimension_numbers<[1], [0], [0], [1], [0, 0, 1, 1], [], []>} : vector<2x256xf32>, vector<256x128xf32>, vector<2x128xf32> -> vector<2x128xf32>
    %c0_15 = arith.constant 0 : index
    %c0_16 = arith.constant 0 : index
    %17 = vector.load %arg7[%c0_15, %c0_16] : memref<1x128xf32, #tpu.memory_space<vmem>>, vector<1x128xf32>
    %18 = vector.broadcast %17 : vector<1x128xf32> to vector<2x128xf32>
    %19 = arith.addf %16, %18 : vector<2x128xf32>
    %cst_17 = arith.constant 0.000000e+00 : f32
    %20 = vector.broadcast %cst_17 : f32 to vector<2x128xf32>
    %21 = arith.maximumf %19, %20 : vector<2x128xf32>
    %c0_18 = arith.constant 0 : index
    %c0_19 = arith.constant 0 : index
    %22 = vector.load %arg8[%c0_18, %c0_19] : memref<128x128xf32, #tpu.memory_space<vmem>>, vector<128x128xf32>
    %cst_20 = arith.constant dense<0.000000e+00> : vector<2x128xf32>
    %23 = tpu.matmul %21, %22, %cst_20 {dimension_numbers = #tpu.dot_dimension_numbers<[1], [0], [0], [1], [0, 0, 1, 1], [], []>} : vector<2x128xf32>, vector<128x128xf32>, vector<2x128xf32> -> vector<2x128xf32>
    %c0_21 = arith.constant 0 : index
    %c0_22 = arith.constant 0 : index
    %24 = vector.load %arg9[%c0_21, %c0_22] : memref<1x128xf32, #tpu.memory_space<vmem>>, vector<1x128xf32>
    %25 = vector.broadcast %24 : vector<1x128xf32> to vector<2x128xf32>
    %26 = arith.addf %23, %25 : vector<2x128xf32>
    %27 = tpu.iota {dimensions = array<i32: 1>} : vector<2x128xi32>
    %c2_i32 = arith.constant 2 : i32
    %28 = vector.broadcast %c2_i32 : i32 to vector<2x128xi32>
    %29 = arith.cmpi slt, %27, %28 : vector<2x128xi32>
    %cst_23 = arith.constant 0.000000e+00 : f32
    %30 = vector.broadcast %cst_23 : f32 to vector<2x128xf32>
    %31 = arith.maximumf %26, %30 : vector<2x128xf32>
    %32 = vector.broadcast %cst_23 : f32 to vector<2x128xf32>
    %33 = arith.subf %26, %32 : vector<2x128xf32>
    %34 = arith.cmpf one, %33, %33 : vector<2x128xf32>
    %35 = vector.broadcast %cst_23 : f32 to vector<2x128xf32>
    %36 = arith.addf %26, %35 : vector<2x128xf32>
    %37 = math.absf %33 : vector<2x128xf32>
    %cst_24 = arith.constant 0.000000e+00 : f32
    %38 = vector.broadcast %cst_24 : f32 to vector<2x128xf32>
    %39 = arith.subf %38, %37 : vector<2x128xf32>
    %40 = math.exp %39 : vector<2x128xf32>
    %41 = math.log1p %40 : vector<2x128xf32>
    %42 = arith.addf %31, %41 : vector<2x128xf32>
    %43 = arith.select %34, %36, %42 : vector<2x128xi1>, vector<2x128xf32>
    %cst_25 = arith.constant 1.000000e+00 : f32
    %44 = vector.broadcast %cst_25 : f32 to vector<2x128xf32>
    %45 = arith.addf %43, %44 : vector<2x128xf32>
    %46 = arith.select %29, %45, %26 : vector<2x128xi1>, vector<2x128xf32>
    %c0_26 = arith.constant 0 : index
    %c0_27 = arith.constant 0 : index
    %47 = vector.load %arg10[%c0_26, %c0_27] : memref<2x128xf32, #tpu.memory_space<vmem>>, vector<2x128xf32>
    tpu.vector_store %arg10[%c0_26, %c0_27], %46 {strides = array<i32>} : memref<2x128xf32, #tpu.memory_space<vmem>>, vector<2x128xf32>,
    return
  }
  func.func @transform_0(%arg0: i32) -> (i32, i32) {
    %c0_i32 = arith.constant 0 : i32
    %c0_i32_0 = arith.constant 0 : i32
    return %arg0, %c0_i32 : i32, i32
  }
  func.func @transform_1(%arg0: i32) -> (i32, i32) {
    %c0_i32 = arith.constant 0 : i32
    %c0_i32_0 = arith.constant 0 : i32
    %c0_i32_1 = arith.constant 0 : i32
    return %c0_i32, %c0_i32_0 : i32, i32
  }
  func.func @transform_2(%arg0: i32) -> (i32, i32) {
    %c0_i32 = arith.constant 0 : i32
    %c0_i32_0 = arith.constant 0 : i32
    %c0_i32_1 = arith.constant 0 : i32
    return %c0_i32, %c0_i32_0 : i32, i32
  }
  func.func @transform_3(%arg0: i32) -> (i32, i32) {
    %c0_i32 = arith.constant 0 : i32
    %c0_i32_0 = arith.constant 0 : i32
    %c0_i32_1 = arith.constant 0 : i32
    return %c0_i32, %c0_i32_0 : i32, i32
  }
  func.func @transform_4(%arg0: i32) -> (i32, i32) {
    %c0_i32 = arith.constant 0 : i32
    %c0_i32_0 = arith.constant 0 : i32
    %c0_i32_1 = arith.constant 0 : i32
    return %c0_i32, %c0_i32_0 : i32, i32
  }
  func.func @transform_5(%arg0: i32) -> (i32, i32) {
    %c0_i32 = arith.constant 0 : i32
    %c0_i32_0 = arith.constant 0 : i32
    %c0_i32_1 = arith.constant 0 : i32
    return %c0_i32, %c0_i32_0 : i32, i32
  }
  func.func @transform_6(%arg0: i32) -> (i32, i32) {
    %c0_i32 = arith.constant 0 : i32
    %c0_i32_0 = arith.constant 0 : i32
    %c0_i32_1 = arith.constant 0 : i32
    return %c0_i32, %c0_i32_0 : i32, i32
  }
  func.func @transform_7(%arg0: i32) -> (i32, i32) {
    %c0_i32 = arith.constant 0 : i32
    %c0_i32_0 = arith.constant 0 : i32
    %c0_i32_1 = arith.constant 0 : i32
    return %c0_i32, %c0_i32_0 : i32, i32
  }
  func.func @transform_8(%arg0: i32) -> (i32, i32) {
    %c0_i32 = arith.constant 0 : i32
    %c0_i32_0 = arith.constant 0 : i32
    %c0_i32_1 = arith.constant 0 : i32
    return %c0_i32, %c0_i32_0 : i32, i32
  }
  func.func @transform_9(%arg0: i32) -> (i32, i32) {
    %c0_i32 = arith.constant 0 : i32
    %c0_i32_0 = arith.constant 0 : i32
    return %arg0, %c0_i32 : i32, i32
  }
}

</mosaic_0001>

<llo_original>
// kernel: tpu_custom_call.1
$region0: #{tpu_custom_call.1}
  #allocation0 [shape = 'u32[]', space=smem, size = 0x4, offset = 0x4, fixed_abs, tag = 'smem constant byte address 0x4 - core index']
  #allocation1 [shape = 'u32[144,128]{1,0:T(1,128)}', space=vmem, size = 0x12000, scoped, tag = 'internal scratch']
  %s0 = inlined_call_operand.hbm [shape: f32[2,44], index: 0, kind: input, shape index: {}]
  %s1 = inlined_call_operand.hbm [shape: f32[44,512], index: 1, kind: input, shape index: {}]
  %s2 = inlined_call_operand.vmem [shape: f32[1,512], index: 2, kind: input, shape index: {}]
  %s3 = inlined_call_operand.hbm [shape: f32[512,256], index: 3, kind: input, shape index: {}]
  %s4 = inlined_call_operand.vmem [shape: f32[1,256], index: 4, kind: input, shape index: {}]
  %s5 = inlined_call_operand.hbm [shape: f32[256,128], index: 5, kind: input, shape index: {}]
  %s6 = inlined_call_operand.vmem [shape: f32[1,128], index: 6, kind: input, shape index: {}]
  %s7 = inlined_call_operand.hbm [shape: f32[128,128], index: 7, kind: input, shape index: {}]
  %s8 = inlined_call_operand.vmem [shape: f32[1,128], index: 8, kind: input, shape index: {}]
  %s9 = inlined_call_operand.hbm [shape: f32[2,128], index: 9, kind: output, shape index: {}]
  %s10 = sld [smem:[#allocation0]]
  $region66: #{tpu_custom_call.1} parent=0
    _
  %s12 = ssub.s32 1, %s10
  %s13 = scalar_select 0, %s12, %s10
  $region1: #{tpu_custom_call.1} parent=0
    #allocation2 [shape = 'u8[1024]{0}', space=vmem, size = 0x400, scoped, tag = 'input window, operand 0, single buffered']
    #allocation3 [shape = 's32[1]{0}', space=sflag, size = 0x4, scoped, tag = 'scoped memory for tpu_custom_call.1']
    #allocation4 [shape = 's32[1]{0}', space=sflag, size = 0x4, scoped, tag = 'scoped memory for tpu_custom_call.1']
    #allocation5 [shape = 'u8[98304]{0}', space=vmem, size = 0x18000, scoped, tag = 'input window, operand 1, single buffered']
    #allocation6 [shape = 's32[1]{0}', space=sflag, size = 0x4, scoped, tag = 'scoped memory for tpu_custom_call.1']
    #allocation7 [shape = 'u8[524288]{0}', space=vmem, size = 0x80000, scoped, tag = 'input window, operand 3, single buffered']
    #allocation8 [shape = 'u8[131072]{0}', space=vmem, size = 0x20000, scoped, tag = 'input window, operand 5, single buffered']
    #allocation9 [shape = 's32[1]{0}', space=sflag, size = 0x4, scoped, tag = 'scoped memory for tpu_custom_call.1']
    #allocation10 [shape = 'u8[65536]{0}', space=vmem, size = 0x10000, scoped, tag = 'input window, operand 7, single buffered']
    #allocation11 [shape = 'u8[1024]{0}', space=vmem, size = 0x400, scoped, tag = 'output window, operand 0, single buffered']
    %14 = vsyncpa [#allocation3], 0
    %15 = vsyncpa [#allocation6], 0
    %16 = vsyncpa [#allocation9], 0
    %17 = vsyncpa [#allocation4], 0
    // Predicated region
    $region2: #{tpu_custom_call.1} parent=1 // pred_check
      _
    $region3: #{tpu_custom_call.1} parent=1 // pred_check_branch
      %19 = sbr.rel (0) target = $region5
    $region4: #{tpu_custom_call.1} parent=1 // pred_region
      %s21 = ssub.s32 32, 32
      %22 = vsyncadd [#allocation3], %s21
      %s24 = sshll.u32 [#allocation2], 4
      %s25 = int_to_ptr.vmem [resolvable:$true] %s24
      %27 = dma.hbm_to_vmem [thread:$0]  %s0, 32, %s25, [#allocation3]
    $region5: #{tpu_custom_call.1} parent=1 // pred_fallthru
      _
    // Predicated region
    $region6: #{tpu_custom_call.1} parent=1 // pred_check
      _
    $region7: #{tpu_custom_call.1} parent=1 // pred_check_branch
      %29 = sbr.rel (0) target = $region9
    $region8: #{tpu_custom_call.1} parent=1 // pred_region
      %s31 = ssub.s32 3072, 3072
      %32 = vsyncadd [#allocation6], %s31
      %s33 = sshll.u32 [#allocation5], 4
      %s34 = int_to_ptr.vmem [resolvable:$true] %s33
      %39 = dma.hbm_to_vmem [thread:$0]  %s1, 3072, %s34, [#allocation6], 512, 512, 32
    $region9: #{tpu_custom_call.1} parent=1 // pred_fallthru
      _
    // Predicated region
    $region10: #{tpu_custom_call.1} parent=1 // pred_check
      _
    $region11: #{tpu_custom_call.1} parent=1 // pred_check_branch
      %41 = sbr.rel (0) target = $region13
    $region12: #{tpu_custom_call.1} parent=1 // pred_region
      _
    $region13: #{tpu_custom_call.1} parent=1 // pred_fallthru
      _
    // Predicated region
    $region14: #{tpu_custom_call.1} parent=1 // pred_check
      _
    $region15: #{tpu_custom_call.1} parent=1 // pred_check_branch
      %43 = sbr.rel (0) target = $region17
    $region16: #{tpu_custom_call.1} parent=1 // pred_region
      %s45 = ssub.s32 16384, 16384
      %46 = vsyncadd [#allocation6], %s45
      %s47 = sshll.u32 [#allocation7], 4
      %s48 = int_to_ptr.vmem [resolvable:$true] %s47
      %53 = dma.hbm_to_vmem [thread:$0]  %s3, 16384, %s48, [#allocation6], 256, 256, 16
    $region17: #{tpu_custom_call.1} parent=1 // pred_fallthru
      _
    // Predicated region
    $region18: #{tpu_custom_call.1} parent=1 // pred_check
      _
    $region19: #{tpu_custom_call.1} parent=1 // pred_check_branch
      %55 = sbr.rel (0) target = $region21
    $region20: #{tpu_custom_call.1} parent=1 // pred_region
      _
    $region21: #{tpu_custom_call.1} parent=1 // pred_fallthru
      _
    // Predicated region
    $region22: #{tpu_custom_call.1} parent=1 // pred_check
      _
    $region23: #{tpu_custom_call.1} parent=1 // pred_check_branch
      %57 = sbr.rel (0) target = $region25
    $region24: #{tpu_custom_call.1} parent=1 // pred_region
      %s59 = ssub.s32 4096, 4096
      %60 = vsyncadd [#allocation9], %s59
      %s61 = sshll.u32 [#allocation8], 4
      %s62 = int_to_ptr.vmem [resolvable:$true] %s61
      %67 = dma.hbm_to_vmem [thread:$0]  %s5, 4096, %s62, [#allocation9], 128, 128, 8
    $region25: #{tpu_custom_call.1} parent=1 // pred_fallthru
      _
    // Predicated region
    $region26: #{tpu_custom_call.1} parent=1 // pred_check
      _
    $region27: #{tpu_custom_call.1} parent=1 // pred_check_branch
      %69 = sbr.rel (0) target = $region29
    $region28: #{tpu_custom_call.1} parent=1 // pred_region
      _
    $region29: #{tpu_custom_call.1} parent=1 // pred_fallthru
      _
    // Predicated region
    $region30: #{tpu_custom_call.1} parent=1 // pred_check
      _
    $region31: #{tpu_custom_call.1} parent=1 // pred_check_branch
      %71 = sbr.rel (0) target = $region33
    $region32: #{tpu_custom_call.1} parent=1 // pred_region
      %s73 = ssub.s32 2048, 2048
      %74 = vsyncadd [#allocation9], %s73
      %s75 = sshll.u32 [#allocation10], 4
      %s76 = int_to_ptr.vmem [resolvable:$true] %s75
      %81 = dma.hbm_to_vmem [thread:$0]  %s7, 2048, %s76, [#allocation9], 128, 128, 8
    $region33: #{tpu_custom_call.1} parent=1 // pred_fallthru
      _
    // Predicated region
    $region34: #{tpu_custom_call.1} parent=1 // pred_check
      _
    $region35: #{tpu_custom_call.1} parent=1 // pred_check_branch
      %83 = sbr.rel (0) target = $region37
    $region36: #{tpu_custom_call.1} parent=1 // pred_region
      _
    $region37: #{tpu_custom_call.1} parent=1 // pred_fallthru
      _
    // Predicated region
    $region38: #{tpu_custom_call.1} parent=1 // pred_check
      _
    $region39: #{tpu_custom_call.1} parent=1 // pred_check_branch
      %85 = sbr.rel (0) target = $region41
    $region40: #{tpu_custom_call.1} parent=1 // pred_region
      %86 = dma.done [#allocation3], 32
    $region41: #{tpu_custom_call.1} parent=1 // pred_fallthru
      _
    // Predicated region
    $region42: #{tpu_custom_call.1} parent=1 // pred_check
      _
    $region43: #{tpu_custom_call.1} parent=1 // pred_check_branch
      %88 = sbr.rel (0) target = $region45
    $region44: #{tpu_custom_call.1} parent=1 // pred_region
      %89 = dma.done [#allocation6], 3072
    $region45: #{tpu_custom_call.1} parent=1 // pred_fallthru
      _
    // Predicated region
    $region46: #{tpu_custom_call.1} parent=1 // pred_check
      _
    $region47: #{tpu_custom_call.1} parent=1 // pred_check_branch
      %91 = sbr.rel (0) target = $region49
    $region48: #{tpu_custom_call.1} parent=1 // pred_region
      %92 = dma.done [#allocation6], 16384
    $region49: #{tpu_custom_call.1} parent=1 // pred_fallthru
      _
    // Predicated region
    $region50: #{tpu_custom_call.1} parent=1 // pred_check
      _
    $region51: #{tpu_custom_call.1} parent=1 // pred_check_branch
      %94 = sbr.rel (0) target = $region53
    $region52: #{tpu_custom_call.1} parent=1 // pred_region
      %95 = dma.done [#allocation9], 4096
    $region53: #{tpu_custom_call.1} parent=1 // pred_fallthru
      _
    // Predicated region
    $region54: #{tpu_custom_call.1} parent=1 // pred_check
      _
    $region55: #{tpu_custom_call.1} parent=1 // pred_check_branch
      %97 = sbr.rel (0) target = $region57
    $region56: #{tpu_custom_call.1} parent=1 // pred_region
      %98 = dma.done [#allocation9], 2048
    $region57: #{tpu_custom_call.1} parent=1 // pred_fallthru
      _
    %v99 = vld [vmem:[#allocation2] sm:$0x3]
    %v100 = vld [vmem:[#allocation5] sm:$0xff]
    %v101 = vld [vmem:[#allocation5 + $0x8] sm:$0xff]
    %v102 = vld [vmem:[#allocation5 + $0x10] sm:$0xff]
    %v103 = vld [vmem:[#allocation5 + $0x18] sm:$0xff]
    %v104 = vld [vmem:[#allocation5 + $0x20] sm:$0xff]
    %v105 = vld [vmem:[#allocation5 + $0x28] sm:$0xff]
    %v106 = vld [vmem:[#allocation5 + $0x30] sm:$0xff]
    %v107 = vld [vmem:[#allocation5 + $0x38] sm:$0xff]
    %v108 = vld [vmem:[#allocation5 + $0x40] sm:$0xff]
    %v109 = vld [vmem:[#allocation5 + $0x48] sm:$0xff]
    %v110 = vld [vmem:[#allocation5 + $0x50] sm:$0xff]
    %v111 = vld [vmem:[#allocation5 + $0x58] sm:$0xff]
    %v112 = vld [vmem:[#allocation5 + $0x60] sm:$0xff]
    %v113 = vld [vmem:[#allocation5 + $0x68] sm:$0xff]
    %v114 = vld [vmem:[#allocation5 + $0x70] sm:$0xff]
    %v115 = vld [vmem:[#allocation5 + $0x78] sm:$0xff]
    %v116 = vld [vmem:[#allocation5 + $0x80] sm:$0xff]
    %v117 = vld [vmem:[#allocation5 + $0x88] sm:$0xff]
    %v118 = vld [vmem:[#allocation5 + $0x90] sm:$0xff]
    %v119 = vld [vmem:[#allocation5 + $0x98] sm:$0xff]
    %v120 = vld [vmem:[#allocation5 + $0xa0] sm:$0xf]
    %v121 = vld [vmem:[#allocation5 + $0xa8] sm:$0xf]
    %v122 = vld [vmem:[#allocation5 + $0xb0] sm:$0xf]
    %v123 = vld [vmem:[#allocation5 + $0xb8] sm:$0xf]
    %v124 = vld [vmem:[%s2] sm:$0xf]
    %v126 = vlaneseq
    %v127 = vshrl.u32 %v126, 7
    %v128 = vsub.s32 0, %v127
    %v129 = vrot.slane %v124, %v128
    %v130 = vlaneseq
    %v131 = vshrl.u32 %v130, 7
    %v132 = vsub.s32 1, %v131
    %v133 = vrot.slane %v124, %v132
    %v134 = vlaneseq
    %v135 = vshrl.u32 %v134, 7
    %v136 = vsub.s32 2, %v135
    %v137 = vrot.slane %v124, %v136
    %v138 = vlaneseq
    %v139 = vshrl.u32 %v138, 7
    %v140 = vsub.s32 3, %v139
    %v141 = vrot.slane %v124, %v140
    %vm146 = vcmask 359424
    %v148 = vsel %vm146, %v99, 0
    %vm150 = vcmask 1043456
    %v152 = vsel %vm150, %v120, 0
    %v155 = vsel %vm150, %v121, 0
    %v158 = vsel %vm150, %v122, 0
    %v161 = vsel %vm150, %v123, 0
    %163 = vmatprep.subr.mxu0 %v101
    %164 = vmatpush1.msra.mxu0 %v100
    %165 = vmatprep.subr.mxu0 %v105
    %166 = vmatpush1.msra.mxu0 %v104
    %167 = vmatprep.subr.mxu0 %v109
    %168 = vmatpush1.msra.mxu0 %v108
    %169 = vmatprep.subr.mxu0 %v113
    %170 = vmatpush1.msra.mxu0 %v112
    %171 = vmatprep.subr.mxu0 %v117
    %172 = vmatpush1.msra.mxu0 %v116
    %173 = vmatprep.subr.mxu0 %v155
    %174 = vmatpush1.msra.mxu0 %v152
    %175 = vmatprep.subr.mxu0 0.0
    %176 = vmatpush1.msra.mxu0 0.0
    %177 = vmatprep.subr.mxu0 0.0
    %178 = vmatpush1.msra.mxu0 0.0
    %179 = vmatprep.subr.mxu0 0.0
    %180 = vmatpush1.msra.mxu0 0.0
    %181 = vmatprep.subr.mxu0 0.0
    %182 = vmatpush1.msra.mxu0 0.0
    %183 = vmatprep.subr.mxu0 0.0
    %184 = vmatpush1.msra.mxu0 0.0
    %185 = vmatprep.subr.mxu0 0.0
    %186 = vmatpush1.msra.mxu0 0.0
    %187 = vmatprep.subr.mxu0 0.0
    %188 = vmatpush1.msra.mxu0 0.0
    %189 = vmatprep.subr.mxu0 0.0
    %190 = vmatpush1.msra.mxu0 0.0
    %191 = vmatprep.subr.mxu0 0.0
    %192 = vmatpush1.msra.mxu0 0.0
    %193 = vmatprep.subr.mxu0 0.0
    %194 = vmatpush1.msra.mxu0 0.0
    %195 = vmatprep.subr.mxu0 0.0
    %196 = vmatpush1.msra.mxu0 0.0
    %197 = vmatprep.subr.mxu0 0.0
    %198 = vmatpush1.msra.mxu0 0.0
    %199 = vmatprep.subr.mxu0 0.0
    %200 = vmatpush1.msra.mxu0 0.0
    %201 = vmatprep.subr.mxu0 0.0
    %202 = vmatpush1.msra.mxu0 0.0
    %203 = vmatprep.subr.mxu0 0.0
    %204 = vmatpush1.msra.mxu0 0.0
    %205 = vmatprep.subr.mxu0 0.0
    %206 = vmatpush1.msra.mxu0 0.0
    %207 = vmatprep.subr.mxu0 0.0
    %208 = vmatpush1.msra.mxu0 0.0
    %209 = vmatprep.subr.mxu0 0.0
    %210 = vmatpush1.msra.mxu0 0.0
    %211 = vmatprep.subr.mxu0 0.0
    %212 = vmatpush1.msra.mxu0 0.0
    %213 = vmatprep.subr.mxu0 0.0
    %214 = vmatpush1.msra.mxu0 0.0
    %215 = vmatprep.subr.mxu0 0.0
    %216 = vmatpush1.msra.mxu0 0.0
    %217 = vmatprep.subr.mxu0 0.0
    %218 = vmatpush1.msra.mxu0 0.0
    %219 = vmatprep.subr.mxu0 0.0
    %220 = vmatpush1.msra.mxu0 0.0
    %221 = vmatprep.subr.mxu0 0.0
    %222 = vmatpush1.msra.mxu0 0.0
    %223 = vmatprep.subr.mxu0 0.0
    %224 = vmatpush1.msra.mxu0 0.0
    %225 = vmatprep.subr.mxu0 0.0
    %226 = vmatpush1.msra.mxu0 0.0
    %227 = vmatprep.mubr.f32.mxu0 0.0
    %228 = vmatmul.mubr.f32.gmra.mrb[0].mxu0 %v148
    %v229 = vpop.f32.mrb[0].mxu0
    %v230 = vadd.f32 %v129, %v229
    %v231 = vpop.f32.mrb[0].mxu0
    %v232 = vadd.f32 %v133, %v231
    %233 = vdwg.mxu0
    %234 = vmatprep.subr.mxu0 %v103
    %235 = vmatpush1.msra.mxu0 %v102
    %236 = vmatprep.subr.mxu0 %v107
    %237 = vmatpush1.msra.mxu0 %v106
    %238 = vmatprep.subr.mxu0 %v111
    %239 = vmatpush1.msra.mxu0 %v110
    %240 = vmatprep.subr.mxu0 %v115
    %241 = vmatpush1.msra.mxu0 %v114
    %242 = vmatprep.subr.mxu0 %v119
    %243 = vmatpush1.msra.mxu0 %v118
    %244 = vmatprep.subr.mxu0 %v161
    %245 = vmatpush1.msra.mxu0 %v158
    %246 = vmatprep.subr.mxu0 0.0
    %247 = vmatpush1.msra.mxu0 0.0
    %248 = vmatprep.subr.mxu0 0.0
    %249 = vmatpush1.msra.mxu0 0.0
    %250 = vmatprep.subr.mxu0 0.0
    %251 = vmatpush1.msra.mxu0 0.0
    %252 = vmatprep.subr.mxu0 0.0
    %253 = vmatpush1.msra.mxu0 0.0
    %254 = vmatprep.subr.mxu0 0.0
    %255 = vmatpush1.msra.mxu0 0.0
    %256 = vmatprep.subr.mxu0 0.0
    %257 = vmatpush1.msra.mxu0 0.0
    %258 = vmatprep.subr.mxu0 0.0
    %259 = vmatpush1.msra.mxu0 0.0
    %260 = vmatprep.subr.mxu0 0.0
    %261 = vmatpush1.msra.mxu0 0.0
    %262 = vmatprep.subr.mxu0 0.0
    %263 = vmatpush1.msra.mxu0 0.0
    %264 = vmatprep.subr.mxu0 0.0
    %265 = vmatpush1.msra.mxu0 0.0
    %266 = vmatprep.subr.mxu0 0.0
    %267 = vmatpush1.msra.mxu0 0.0
    %268 = vmatprep.subr.mxu0 0.0
    %269 = vmatpush1.msra.mxu0 0.0
    %270 = vmatprep.subr.mxu0 0.0
    %271 = vmatpush1.msra.mxu0 0.0
    %272 = vmatprep.subr.mxu0 0.0
    %273 = vmatpush1.msra.mxu0 0.0
    %274 = vmatprep.subr.mxu0 0.0
    %275 = vmatpush1.msra.mxu0 0.0
    %276 = vmatprep.subr.mxu0 0.0
    %277 = vmatpush1.msra.mxu0 0.0
    %278 = vmatprep.subr.mxu0 0.0
    %279 = vmatpush1.msra.mxu0 0.0
    %280 = vmatprep.subr.mxu0 0.0
    %281 = vmatpush1.msra.mxu0 0.0
    %282 = vmatprep.subr.mxu0 0.0
    %283 = vmatpush1.msra.mxu0 0.0
    %284 = vmatprep.subr.mxu0 0.0
    %285 = vmatpush1.msra.mxu0 0.0
    %286 = vmatprep.subr.mxu0 0.0
    %287 = vmatpush1.msra.mxu0 0.0
    %288 = vmatprep.subr.mxu0 0.0
    %289 = vmatpush1.msra.mxu0 0.0
    %290 = vmatprep.subr.mxu0 0.0
    %291 = vmatpush1.msra.mxu0 0.0
    %292 = vmatprep.subr.mxu0 0.0
    %293 = vmatpush1.msra.mxu0 0.0
    %294 = vmatprep.subr.mxu0 0.0
    %295 = vmatpush1.msra.mxu0 0.0
    %296 = vmatprep.subr.mxu0 0.0
    %297 = vmatpush1.msra.mxu0 0.0
    %298 = vmatprep.mubr.f32.mxu0 0.0
    %299 = vmatmul.mubr.f32.gmra.mrb[0].mxu0 %v148
    %v300 = vpop.f32.mrb[0].mxu0
    %v301 = vadd.f32 %v137, %v300
    %v302 = vpop.f32.mrb[0].mxu0
    %v303 = vadd.f32 %v141, %v302
    %304 = vdwg.mxu0
    %v305 = vmax.f32 %v230, 0.0
    %v306 = vmax.f32 %v232, 0.0
    %v307 = vmax.f32 %v301, 0.0
    %v308 = vmax.f32 %v303, 0.0
    %v309 = vld [vmem:[#allocation7] sm:$0xff]
    %v310 = vld [vmem:[#allocation7 + $0x8] sm:$0xff]
    %v311 = vld [vmem:[#allocation7 + $0x10] sm:$0xff]
    %v312 = vld [vmem:[#allocation7 + $0x18] sm:$0xff]
    %v313 = vld [vmem:[#allocation7 + $0x20] sm:$0xff]
    %v314 = vld [vmem:[#allocation7 + $0x28] sm:$0xff]
    %v315 = vld [vmem:[#allocation7 + $0x30] sm:$0xff]
    %v316 = vld [vmem:[#allocation7 + $0x38] sm:$0xff]
    %v317 = vld [vmem:[#allocation7 + $0x40] sm:$0xff]
    %v318 = vld [vmem:[#allocation7 + $0x48] sm:$0xff]
    %v319 = vld [vmem:[#allocation7 + $0x50] sm:$0xff]
    %v320 = vld [vmem:[#allocation7 + $0x58] sm:$0xff]
    %v321 = vld [vmem:[#allocation7 + $0x60] sm:$0xff]
    %v322 = vld [vmem:[#allocation7 + $0x68] sm:$0xff]
    %v323 = vld [vmem:[#allocation7 + $0x70] sm:$0xff]
    %v324 = vld [vmem:[#allocation7 + $0x78] sm:$0xff]
    %v325 = vld [vmem:[#allocation7 + $0x80] sm:$0xff]
    %v326 = vld [vmem:[#allocation7 + $0x88] sm:$0xff]
    %v327 = vld [vmem:[#allocation7 + $0x90] sm:$0xff]
    %v328 = vld [vmem:[#allocation7 + $0x98] sm:$0xff]
    %v329 = vld [vmem:[#allocation7 + $0xa0] sm:$0xff]
    %v330 = vld [vmem:[#allocation7 + $0xa8] sm:$0xff]
    %v331 = vld [vmem:[#allocation7 + $0xb0] sm:$0xff]
    %v332 = vld [vmem:[#allocation7 + $0xb8] sm:$0xff]
    %v333 = vld [vmem:[#allocation7 + $0xc0] sm:$0xff]
    %v334 = vld [vmem:[#allocation7 + $0xc8] sm:$0xff]
    %v335 = vld [vmem:[#allocation7 + $0xd0] sm:$0xff]
    %v336 = vld [vmem:[#allocation7 + $0xd8] sm:$0xff]
    %v337 = vld [vmem:[#allocation7 + $0xe0] sm:$0xff]
    %v338 = vld [vmem:[#allocation7 + $0xe8] sm:$0xff]
    %v339 = vld [vmem:[#allocation7 + $0xf0] sm:$0xff]
    %v340 = vld [vmem:[#allocation7 + $0xf8] sm:$0xff]
    %v341 = vld [vmem:[#allocation7 + $0x100] sm:$0xff]
    %v342 = vld [vmem:[#allocation7 + $0x108] sm:$0xff]
    %v343 = vld [vmem:[#allocation7 + $0x110] sm:$0xff]
    %v344 = vld [vmem:[#allocation7 + $0x118] sm:$0xff]
    %v345 = vld [vmem:[#allocation7 + $0x120] sm:$0xff]
    %v346 = vld [vmem:[#allocation7 + $0x128] sm:$0xff]
    %v347 = vld [vmem:[#allocation7 + $0x130] sm:$0xff]
    %v348 = vld [vmem:[#allocation7 + $0x138] sm:$0xff]
    %v349 = vld [vmem:[#allocation7 + $0x140] sm:$0xff]
    %v350 = vld [vmem:[#allocation7 + $0x148] sm:$0xff]
    %v351 = vld [vmem:[#allocation7 + $0x150] sm:$0xff]
    %v352 = vld [vmem:[#allocation7 + $0x158] sm:$0xff]
    %v353 = vld [vmem:[#allocation7 + $0x160] sm:$0xff]
    %v354 = vld [vmem:[#allocation7 + $0x168] sm:$0xff]
    %v355 = vld [vmem:[#allocation7 + $0x170] sm:$0xff]
    %v356 = vld [vmem:[#allocation7 + $0x178] sm:$0xff]
    %v357 = vld [vmem:[#allocation7 + $0x180] sm:$0xff]
    %v358 = vld [vmem:[#allocation7 + $0x188] sm:$0xff]
    %v359 = vld [vmem:[#allocation7 + $0x190] sm:$0xff]
    %v360 = vld [vmem:[#allocation7 + $0x198] sm:$0xff]
    %v361 = vld [vmem:[#allocation7 + $0x1a0] sm:$0xff]
    %v362 = vld [vmem:[#allocation7 + $0x1a8] sm:$0xff]
    %v363 = vld [vmem:[#allocation7 + $0x1b0] sm:$0xff]
    %v364 = vld [vmem:[#allocation7 + $0x1b8] sm:$0xff]
    %v365 = vld [vmem:[#allocation7 + $0x1c0] sm:$0xff]
    %v366 = vld [vmem:[#allocation7 + $0x1c8] sm:$0xff]
    %v367 = vld [vmem:[#allocation7 + $0x1d0] sm:$0xff]
    %v368 = vld [vmem:[#allocation7 + $0x1d8] sm:$0xff]
    %v369 = vld [vmem:[#allocation7 + $0x1e0] sm:$0xff]
    %v370 = vld [vmem:[#allocation7 + $0x1e8] sm:$0xff]
    %v371 = vld [vmem:[#allocation7 + $0x1f0] sm:$0xff]
    %v372 = vld [vmem:[#allocation7 + $0x1f8] sm:$0xff]
    %v373 = vld [vmem:[#allocation7 + $0x200] sm:$0xff]
    %v374 = vld [vmem:[#allocation7 + $0x208] sm:$0xff]
    %v375 = vld [vmem:[#allocation7 + $0x210] sm:$0xff]
    %v376 = vld [vmem:[#allocation7 + $0x218] sm:$0xff]
    %v377 = vld [vmem:[#allocation7 + $0x220] sm:$0xff]
    %v378 = vld [vmem:[#allocation7 + $0x228] sm:$0xff]
    %v379 = vld [vmem:[#allocation7 + $0x230] sm:$0xff]
    %v380 = vld [vmem:[#allocation7 + $0x238] sm:$0xff]
    %v381 = vld [vmem:[#allocation7 + $0x240] sm:$0xff]
    %v382 = vld [vmem:[#allocation7 + $0x248] sm:$0xff]
    %v383 = vld [vmem:[#allocation7 + $0x250] sm:$0xff]
    %v384 = vld [vmem:[#allocation7 + $0x258] sm:$0xff]
    %v385 = vld [vmem:[#allocation7 + $0x260] sm:$0xff]
    %v386 = vld [vmem:[#allocation7 + $0x268] sm:$0xff]
    %v387 = vld [vmem:[#allocation7 + $0x270] sm:$0xff]
    %v388 = vld [vmem:[#allocation7 + $0x278] sm:$0xff]
    %v389 = vld [vmem:[#allocation7 + $0x280] sm:$0xff]
    %v390 = vld [vmem:[#allocation7 + $0x288] sm:$0xff]
    %v391 = vld [vmem:[#allocation7 + $0x290] sm:$0xff]
    %v392 = vld [vmem:[#allocation7 + $0x298] sm:$0xff]
    %v393 = vld [vmem:[#allocation7 + $0x2a0] sm:$0xff]
    %v394 = vld [vmem:[#allocation7 + $0x2a8] sm:$0xff]
    %v395 = vld [vmem:[#allocation7 + $0x2b0] sm:$0xff]
    %v396 = vld [vmem:[#allocation7 + $0x2b8] sm:$0xff]
    %v397 = vld [vmem:[#allocation7 + $0x2c0] sm:$0xff]
    %v398 = vld [vmem:[#allocation7 + $0x2c8] sm:$0xff]
    %v399 = vld [vmem:[#allocation7 + $0x2d0] sm:$0xff]
    %v400 = vld [vmem:[#allocation7 + $0x2d8] sm:$0xff]
    %v401 = vld [vmem:[#allocation7 + $0x2e0] sm:$0xff]
    %v402 = vld [vmem:[#allocation7 + $0x2e8] sm:$0xff]
    %v403 = vld [vmem:[#allocation7 + $0x2f0] sm:$0xff]
    %v404 = vld [vmem:[#allocation7 + $0x2f8] sm:$0xff]
    %v405 = vld [vmem:[#allocation7 + $0x300] sm:$0xff]
    %v406 = vld [vmem:[#allocation7 + $0x308] sm:$0xff]
    %v407 = vld [vmem:[#allocation7 + $0x310] sm:$0xff]
    %v408 = vld [vmem:[#allocation7 + $0x318] sm:$0xff]
    %v409 = vld [vmem:[#allocation7 + $0x320] sm:$0xff]
    %v410 = vld [vmem:[#allocation7 + $0x328] sm:$0xff]
    %v411 = vld [vmem:[#allocation7 + $0x330] sm:$0xff]
    %v412 = vld [vmem:[#allocation7 + $0x338] sm:$0xff]
    %v413 = vld [vmem:[#allocation7 + $0x340] sm:$0xff]
    %v414 = vld [vmem:[#allocation7 + $0x348] sm:$0xff]
    %v415 = vld [vmem:[#allocation7 + $0x350] sm:$0xff]
    %v416 = vld [vmem:[#allocation7 + $0x358] sm:$0xff]
    %v417 = vld [vmem:[#allocation7 + $0x360] sm:$0xff]
    %v418 = vld [vmem:[#allocation7 + $0x368] sm:$0xff]
    %v419 = vld [vmem:[#allocation7 + $0x370] sm:$0xff]
    %v420 = vld [vmem:[#allocation7 + $0x378] sm:$0xff]
    %v421 = vld [vmem:[#allocation7 + $0x380] sm:$0xff]
    %v422 = vld [vmem:[#allocation7 + $0x388] sm:$0xff]
    %v423 = vld [vmem:[#allocation7 + $0x390] sm:$0xff]
    %v424 = vld [vmem:[#allocation7 + $0x398] sm:$0xff]
    %v425 = vld [vmem:[#allocation7 + $0x3a0] sm:$0xff]
    %v426 = vld [vmem:[#allocation7 + $0x3a8] sm:$0xff]
    %v427 = vld [vmem:[#allocation7 + $0x3b0] sm:$0xff]
    %v428 = vld [vmem:[#allocation7 + $0x3b8] sm:$0xff]
    %v429 = vld [vmem:[#allocation7 + $0x3c0] sm:$0xff]
    %v430 = vld [vmem:[#allocation7 + $0x3c8] sm:$0xff]
    %v431 = vld [vmem:[#allocation7 + $0x3d0] sm:$0xff]
    %v432 = vld [vmem:[#allocation7 + $0x3d8] sm:$0xff]
    %v433 = vld [vmem:[#allocation7 + $0x3e0] sm:$0xff]
    %v434 = vld [vmem:[#allocation7 + $0x3e8] sm:$0xff]
    %v435 = vld [vmem:[#allocation7 + $0x3f0] sm:$0xff]
    %v436 = vld [vmem:[#allocation7 + $0x3f8] sm:$0xff]
    %v437 = vld [vmem:[%s4] sm:$0x3]
    %v439 = vlaneseq
    %v440 = vshrl.u32 %v439, 7
    %v441 = vsub.s32 0, %v440
    %v442 = vrot.slane %v437, %v441
    %v443 = vlaneseq
    %v444 = vshrl.u32 %v443, 7
    %v445 = vsub.s32 1, %v444
    %v446 = vrot.slane %v437, %v445
    %449 = vmatprep.subr.mxu0 %v310
    %450 = vmatpush1.msra.mxu0 %v309
    %451 = vmatprep.subr.mxu0 %v312
    %452 = vmatpush1.msra.mxu0 %v311
    %453 = vmatprep.subr.mxu0 %v314
    %454 = vmatpush1.msra.mxu0 %v313
    %455 = vmatprep.subr.mxu0 %v316
    %456 = vmatpush1.msra.mxu0 %v315
    %457 = vmatprep.subr.mxu0 %v318
    %458 = vmatpush1.msra.mxu0 %v317
    %459 = vmatprep.subr.mxu0 %v320
    %460 = vmatpush1.msra.mxu0 %v319
    %461 = vmatprep.subr.mxu0 %v322
    %462 = vmatpush1.msra.mxu0 %v321
    %463 = vmatprep.subr.mxu0 %v324
    %464 = vmatpush1.msra.mxu0 %v323
    %465 = vmatprep.subr.mxu0 %v326
    %466 = vmatpush1.msra.mxu0 %v325
    %467 = vmatprep.subr.mxu0 %v328
    %468 = vmatpush1.msra.mxu0 %v327
    %469 = vmatprep.subr.mxu0 %v330
    %470 = vmatpush1.msra.mxu0 %v329
    %471 = vmatprep.subr.mxu0 %v332
    %472 = vmatpush1.msra.mxu0 %v331
    %473 = vmatprep.subr.mxu0 %v334
    %474 = vmatpush1.msra.mxu0 %v333
    %475 = vmatprep.subr.mxu0 %v336
    %476 = vmatpush1.msra.mxu0 %v335
    %477 = vmatprep.subr.mxu0 %v338
    %478 = vmatpush1.msra.mxu0 %v337
    %479 = vmatprep.subr.mxu0 %v340
    %480 = vmatpush1.msra.mxu0 %v339
    %481 = vmatprep.subr.mxu0 %v342
    %482 = vmatpush1.msra.mxu0 %v341
    %483 = vmatprep.subr.mxu0 %v344
    %484 = vmatpush1.msra.mxu0 %v343
    %485 = vmatprep.subr.mxu0 %v346
    %486 = vmatpush1.msra.mxu0 %v345
    %487 = vmatprep.subr.mxu0 %v348
    %488 = vmatpush1.msra.mxu0 %v347
    %489 = vmatprep.subr.mxu0 %v350
    %490 = vmatpush1.msra.mxu0 %v349
    %491 = vmatprep.subr.mxu0 %v352
    %492 = vmatpush1.msra.mxu0 %v351
    %493 = vmatprep.subr.mxu0 %v354
    %494 = vmatpush1.msra.mxu0 %v353
    %495 = vmatprep.subr.mxu0 %v356
    %496 = vmatpush1.msra.mxu0 %v355
    %497 = vmatprep.subr.mxu0 %v358
    %498 = vmatpush1.msra.mxu0 %v357
    %499 = vmatprep.subr.mxu0 %v360
    %500 = vmatpush1.msra.mxu0 %v359
    %501 = vmatprep.subr.mxu0 %v362
    %502 = vmatpush1.msra.mxu0 %v361
    %503 = vmatprep.subr.mxu0 %v364
    %504 = vmatpush1.msra.mxu0 %v363
    %505 = vmatprep.subr.mxu0 %v366
    %506 = vmatpush1.msra.mxu0 %v365
    %507 = vmatprep.subr.mxu0 %v368
    %508 = vmatpush1.msra.mxu0 %v367
    %509 = vmatprep.subr.mxu0 %v370
    %510 = vmatpush1.msra.mxu0 %v369
    %511 = vmatprep.subr.mxu0 %v372
    %512 = vmatpush1.msra.mxu0 %v371
    %513 = vmatprep.mubr.f32.mxu0 %v306
    %514 = vmatmul.mubr.f32.gmra.mrb[0].mxu0 %v305
    %v515 = vpop.f32.mrb[0].mxu0
    %v516 = vadd.f32 %v442, %v515
    %v517 = vpop.f32.mrb[0].mxu0
    %v518 = vadd.f32 %v446, %v517
    %519 = vdwg.mxu0
    %520 = vmatprep.subr.mxu0 %v374
    %521 = vmatpush1.msra.mxu0 %v373
    %522 = vmatprep.subr.mxu0 %v376
    %523 = vmatpush1.msra.mxu0 %v375
    %524 = vmatprep.subr.mxu0 %v378
    %525 = vmatpush1.msra.mxu0 %v377
    %526 = vmatprep.subr.mxu0 %v380
    %527 = vmatpush1.msra.mxu0 %v379
    %528 = vmatprep.subr.mxu0 %v382
    %529 = vmatpush1.msra.mxu0 %v381
    %530 = vmatprep.subr.mxu0 %v384
    %531 = vmatpush1.msra.mxu0 %v383
    %532 = vmatprep.subr.mxu0 %v386
    %533 = vmatpush1.msra.mxu0 %v385
    %534 = vmatprep.subr.mxu0 %v388
    %535 = vmatpush1.msra.mxu0 %v387
    %536 = vmatprep.subr.mxu0 %v390
    %537 = vmatpush1.msra.mxu0 %v389
    %538 = vmatprep.subr.mxu0 %v392
    %539 = vmatpush1.msra.mxu0 %v391
    %540 = vmatprep.subr.mxu0 %v394
    %541 = vmatpush1.msra.mxu0 %v393
    %542 = vmatprep.subr.mxu0 %v396
    %543 = vmatpush1.msra.mxu0 %v395
    %544 = vmatprep.subr.mxu0 %v398
    %545 = vmatpush1.msra.mxu0 %v397
    %546 = vmatprep.subr.mxu0 %v400
    %547 = vmatpush1.msra.mxu0 %v399
    %548 = vmatprep.subr.mxu0 %v402
    %549 = vmatpush1.msra.mxu0 %v401
    %550 = vmatprep.subr.mxu0 %v404
    %551 = vmatpush1.msra.mxu0 %v403
    %552 = vmatprep.subr.mxu0 %v406
    %553 = vmatpush1.msra.mxu0 %v405
    %554 = vmatprep.subr.mxu0 %v408
    %555 = vmatpush1.msra.mxu0 %v407
    %556 = vmatprep.subr.mxu0 %v410
    %557 = vmatpush1.msra.mxu0 %v409
    %558 = vmatprep.subr.mxu0 %v412
    %559 = vmatpush1.msra.mxu0 %v411
    %560 = vmatprep.subr.mxu0 %v414
    %561 = vmatpush1.msra.mxu0 %v413
    %562 = vmatprep.subr.mxu0 %v416
    %563 = vmatpush1.msra.mxu0 %v415
    %564 = vmatprep.subr.mxu0 %v418
    %565 = vmatpush1.msra.mxu0 %v417
    %566 = vmatprep.subr.mxu0 %v420
    %567 = vmatpush1.msra.mxu0 %v419
    %568 = vmatprep.subr.mxu0 %v422
    %569 = vmatpush1.msra.mxu0 %v421
    %570 = vmatprep.subr.mxu0 %v424
    %571 = vmatpush1.msra.mxu0 %v423
    %572 = vmatprep.subr.mxu0 %v426
    %573 = vmatpush1.msra.mxu0 %v425
    %574 = vmatprep.subr.mxu0 %v428
    %575 = vmatpush1.msra.mxu0 %v427
    %576 = vmatprep.subr.mxu0 %v430
    %577 = vmatpush1.msra.mxu0 %v429
    %578 = vmatprep.subr.mxu0 %v432
    %579 = vmatpush1.msra.mxu0 %v431
    %580 = vmatprep.subr.mxu0 %v434
    %581 = vmatpush1.msra.mxu0 %v433
    %582 = vmatprep.subr.mxu0 %v436
    %583 = vmatpush1.msra.mxu0 %v435
    %584 = vmatprep.mubr.f32.mxu0 %v308
    %585 = vmatmul.mubr.f32.gmra.mrb[0].mxu0 %v307
    %v586 = vpop.f32.mrb[0].mxu0
    %v587 = vadd.f32 %v516, %v586
    %v588 = vpop.f32.mrb[0].mxu0
    %v589 = vadd.f32 %v518, %v588
    %590 = vdwg.mxu0
    %v591 = vmax.f32 %v587, 0.0
    %v592 = vmax.f32 %v589, 0.0
    %v593 = vld [vmem:[#allocation8] sm:$0xff]
    %v594 = vld [vmem:[#allocation8 + $0x8] sm:$0xff]
    %v595 = vld [vmem:[#allocation8 + $0x10] sm:$0xff]
    %v596 = vld [vmem:[#allocation8 + $0x18] sm:$0xff]
    %v597 = vld [vmem:[#allocation8 + $0x20] sm:$0xff]
    %v598 = vld [vmem:[#allocation8 + $0x28] sm:$0xff]
    %v599 = vld [vmem:[#allocation8 + $0x30] sm:$0xff]
    %v600 = vld [vmem:[#allocation8 + $0x38] sm:$0xff]
    %v601 = vld [vmem:[#allocation8 + $0x40] sm:$0xff]
    %v602 = vld [vmem:[#allocation8 + $0x48] sm:$0xff]
    %v603 = vld [vmem:[#allocation8 + $0x50] sm:$0xff]
    %v604 = vld [vmem:[#allocation8 + $0x58] sm:$0xff]
    %v605 = vld [vmem:[#allocation8 + $0x60] sm:$0xff]
    %v606 = vld [vmem:[#allocation8 + $0x68] sm:$0xff]
    %v607 = vld [vmem:[#allocation8 + $0x70] sm:$0xff]
    %v608 = vld [vmem:[#allocation8 + $0x78] sm:$0xff]
    %v609 = vld [vmem:[#allocation8 + $0x80] sm:$0xff]
    %v610 = vld [vmem:[#allocation8 + $0x88] sm:$0xff]
    %v611 = vld [vmem:[#allocation8 + $0x90] sm:$0xff]
    %v612 = vld [vmem:[#allocation8 + $0x98] sm:$0xff]
    %v613 = vld [vmem:[#allocation8 + $0xa0] sm:$0xff]
    %v614 = vld [vmem:[#allocation8 + $0xa8] sm:$0xff]
    %v615 = vld [vmem:[#allocation8 + $0xb0] sm:$0xff]
    %v616 = vld [vmem:[#allocation8 + $0xb8] sm:$0xff]
    %v617 = vld [vmem:[#allocation8 + $0xc0] sm:$0xff]
    %v618 = vld [vmem:[#allocation8 + $0xc8] sm:$0xff]
    %v619 = vld [vmem:[#allocation8 + $0xd0] sm:$0xff]
    %v620 = vld [vmem:[#allocation8 + $0xd8] sm:$0xff]
    %v621 = vld [vmem:[#allocation8 + $0xe0] sm:$0xff]
    %v622 = vld [vmem:[#allocation8 + $0xe8] sm:$0xff]
    %v623 = vld [vmem:[#allocation8 + $0xf0] sm:$0xff]
    %v624 = vld [vmem:[#allocation8 + $0xf8] sm:$0xff]
    %v625 = vld [vmem:[%s6] sm:$0x1]
    %v627 = vlaneseq
    %v628 = vshrl.u32 %v627, 7
    %v629 = vsub.s32 0, %v628
    %v630 = vrot.slane %v625, %v629
    %632 = vmatprep.subr.mxu0 0.0
    %633 = vmatpush1.msra.mxu0 %v593
    %634 = vmatprep.subr.mxu0 0.0
    %635 = vmatpush1.msra.mxu0 %v594
    %636 = vmatprep.subr.mxu0 0.0
    %637 = vmatpush1.msra.mxu0 %v595
    %638 = vmatprep.subr.mxu0 0.0
    %639 = vmatpush1.msra.mxu0 %v596
    %640 = vmatprep.subr.mxu0 0.0
    %641 = vmatpush1.msra.mxu0 %v597
    %642 = vmatprep.subr.mxu0 0.0
    %643 = vmatpush1.msra.mxu0 %v598
    %644 = vmatprep.subr.mxu0 0.0
    %645 = vmatpush1.msra.mxu0 %v599
    %646 = vmatprep.subr.mxu0 0.0
    %647 = vmatpush1.msra.mxu0 %v600
    %648 = vmatprep.subr.mxu0 0.0
    %649 = vmatpush1.msra.mxu0 %v601
    %650 = vmatprep.subr.mxu0 0.0
    %651 = vmatpush1.msra.mxu0 %v602
    %652 = vmatprep.subr.mxu0 0.0
    %653 = vmatpush1.msra.mxu0 %v603
    %654 = vmatprep.subr.mxu0 0.0
    %655 = vmatpush1.msra.mxu0 %v604
    %656 = vmatprep.subr.mxu0 0.0
    %657 = vmatpush1.msra.mxu0 %v605
    %658 = vmatprep.subr.mxu0 0.0
    %659 = vmatpush1.msra.mxu0 %v606
    %660 = vmatprep.subr.mxu0 0.0
    %661 = vmatpush1.msra.mxu0 %v607
    %662 = vmatprep.subr.mxu0 0.0
    %663 = vmatpush1.msra.mxu0 %v608
    %664 = vmatprep.subr.mxu0 0.0
    %665 = vmatpush1.msra.mxu0 %v609
    %666 = vmatprep.subr.mxu0 0.0
    %667 = vmatpush1.msra.mxu0 %v610
    %668 = vmatprep.subr.mxu0 0.0
    %669 = vmatpush1.msra.mxu0 %v611
    %670 = vmatprep.subr.mxu0 0.0
    %671 = vmatpush1.msra.mxu0 %v612
    %672 = vmatprep.subr.mxu0 0.0
    %673 = vmatpush1.msra.mxu0 %v613
    %674 = vmatprep.subr.mxu0 0.0
    %675 = vmatpush1.msra.mxu0 %v614
    %676 = vmatprep.subr.mxu0 0.0
    %677 = vmatpush1.msra.mxu0 %v615
    %678 = vmatprep.subr.mxu0 0.0
    %679 = vmatpush1.msra.mxu0 %v616
    %680 = vmatprep.subr.mxu0 0.0
    %681 = vmatpush1.msra.mxu0 %v617
    %682 = vmatprep.subr.mxu0 0.0
    %683 = vmatpush1.msra.mxu0 %v618
    %684 = vmatprep.subr.mxu0 0.0
    %685 = vmatpush1.msra.mxu0 %v619
    %686 = vmatprep.subr.mxu0 0.0
    %687 = vmatpush1.msra.mxu0 %v620
    %688 = vmatprep.subr.mxu0 0.0
    %689 = vmatpush1.msra.mxu0 %v621
    %690 = vmatprep.subr.mxu0 0.0
    %691 = vmatpush1.msra.mxu0 %v622
    %692 = vmatprep.subr.mxu0 0.0
    %693 = vmatpush1.msra.mxu0 %v623
    %694 = vmatprep.subr.mxu0 0.0
    %695 = vmatpush1.msra.mxu0 %v624
    %696 = vmatprep.mubr.f32.mxu0 %v592
    %697 = vmatmul.mubr.f32.gmra.mrb[0].mxu0 %v591
    %v698 = vpop.f32.mrb[0].mxu0
    %v699 = vadd.f32 %v630, %v698
    %v700 = vpop.f32.mrb[0].mxu0
    %701 = vdwg.mxu0
    %v702 = vmax.f32 %v699, 0.0
    %v703 = vld [vmem:[#allocation10] sm:$0xff]
    %v704 = vld [vmem:[#allocation10 + $0x8] sm:$0xff]
    %v705 = vld [vmem:[#allocation10 + $0x10] sm:$0xff]
    %v706 = vld [vmem:[#allocation10 + $0x18] sm:$0xff]
    %v707 = vld [vmem:[#allocation10 + $0x20] sm:$0xff]
    %v708 = vld [vmem:[#allocation10 + $0x28] sm:$0xff]
    %v709 = vld [vmem:[#allocation10 + $0x30] sm:$0xff]
    %v710 = vld [vmem:[#allocation10 + $0x38] sm:$0xff]
    %v711 = vld [vmem:[#allocation10 + $0x40] sm:$0xff]
    %v712 = vld [vmem:[#allocation10 + $0x48] sm:$0xff]
    %v713 = vld [vmem:[#allocation10 + $0x50] sm:$0xff]
    %v714 = vld [vmem:[#allocation10 + $0x58] sm:$0xff]
    %v715 = vld [vmem:[#allocation10 + $0x60] sm:$0xff]
    %v716 = vld [vmem:[#allocation10 + $0x68] sm:$0xff]
    %v717 = vld [vmem:[#allocation10 + $0x70] sm:$0xff]
    %v718 = vld [vmem:[#allocation10 + $0x78] sm:$0xff]
    %v719 = vld [vmem:[%s8] sm:$0x1]
    %v721 = vlaneseq
    %v722 = vshrl.u32 %v721, 7
    %v723 = vsub.s32 0, %v722
    %v724 = vrot.slane %v719, %v723
    %726 = vmatprep.subr.mxu0 0.0
    %727 = vmatpush1.msra.mxu0 %v703
    %728 = vmatprep.subr.mxu0 0.0
    %729 = vmatpush1.msra.mxu0 %v704
    %730 = vmatprep.subr.mxu0 0.0
    %731 = vmatpush1.msra.mxu0 %v705
    %732 = vmatprep.subr.mxu0 0.0
    %733 = vmatpush1.msra.mxu0 %v706
    %734 = vmatprep.subr.mxu0 0.0
    %735 = vmatpush1.msra.mxu0 %v707
    %736 = vmatprep.subr.mxu0 0.0
    %737 = vmatpush1.msra.mxu0 %v708
    %738 = vmatprep.subr.mxu0 0.0
    %739 = vmatpush1.msra.mxu0 %v709
    %740 = vmatprep.subr.mxu0 0.0
    %741 = vmatpush1.msra.mxu0 %v710
    %742 = vmatprep.subr.mxu0 0.0
    %743 = vmatpush1.msra.mxu0 %v711
    %744 = vmatprep.subr.mxu0 0.0
    %745 = vmatpush1.msra.mxu0 %v712
    %746 = vmatprep.subr.mxu0 0.0
    %747 = vmatpush1.msra.mxu0 %v713
    %748 = vmatprep.subr.mxu0 0.0
    %749 = vmatpush1.msra.mxu0 %v714
    %750 = vmatprep.subr.mxu0 0.0
    %751 = vmatpush1.msra.mxu0 %v715
    %752 = vmatprep.subr.mxu0 0.0
    %753 = vmatpush1.msra.mxu0 %v716
    %754 = vmatprep.subr.mxu0 0.0
    %755 = vmatpush1.msra.mxu0 %v717
    %756 = vmatprep.subr.mxu0 0.0
    %757 = vmatpush1.msra.mxu0 %v718
    %758 = vmatprep.subr.mxu0 0.0
    %759 = vmatpush1.msra.mxu0 0.0
    %760 = vmatprep.subr.mxu0 0.0
    %761 = vmatpush1.msra.mxu0 0.0
    %762 = vmatprep.subr.mxu0 0.0
    %763 = vmatpush1.msra.mxu0 0.0
    %764 = vmatprep.subr.mxu0 0.0
    %765 = vmatpush1.msra.mxu0 0.0
    %766 = vmatprep.subr.mxu0 0.0
    %767 = vmatpush1.msra.mxu0 0.0
    %768 = vmatprep.subr.mxu0 0.0
    %769 = vmatpush1.msra.mxu0 0.0
    %770 = vmatprep.subr.mxu0 0.0
    %771 = vmatpush1.msra.mxu0 0.0
    %772 = vmatprep.subr.mxu0 0.0
    %773 = vmatpush1.msra.mxu0 0.0
    %774 = vmatprep.subr.mxu0 0.0
    %775 = vmatpush1.msra.mxu0 0.0
    %776 = vmatprep.subr.mxu0 0.0
    %777 = vmatpush1.msra.mxu0 0.0
    %778 = vmatprep.subr.mxu0 0.0
    %779 = vmatpush1.msra.mxu0 0.0
    %780 = vmatprep.subr.mxu0 0.0
    %781 = vmatpush1.msra.mxu0 0.0
    %782 = vmatprep.subr.mxu0 0.0
    %783 = vmatpush1.msra.mxu0 0.0
    %784 = vmatprep.subr.mxu0 0.0
    %785 = vmatpush1.msra.mxu0 0.0
    %786 = vmatprep.subr.mxu0 0.0
    %787 = vmatpush1.msra.mxu0 0.0
    %788 = vmatprep.subr.mxu0 0.0
    %789 = vmatpush1.msra.mxu0 0.0
    %790 = vmatprep.mubr.f32.mxu0 0.0
    %791 = vmatmul.mubr.f32.gmra.mrb[0].mxu0 %v702
    %v792 = vpop.f32.mrb[0].mxu0
    %v793 = vadd.f32 %v724, %v792
    %v794 = vpop.f32.mrb[0].mxu0
    %795 = vdwg.mxu0
    %v796 = vlaneseq
    %v797 = vand.u32 %v796, 127
    %vm798 = vcmp.lt.s32.totalorder %v797, 2
    %v799 = vmax.f32 %v793, 0.0
    %vm800 = vcmp.ne.f32.partialorder %v793, %v793
    %v801 = vadd.f32 %v793, 0.0
    %v802 = vand.u32 2147483647, %v793
    %v803 = vsub.f32 0.0, %v802
    %v804 = vmul.f32 %v803, 1.442695
    %v805 = vpow.pop %v804
    %v806 = vadd.f32 %v805, 1.0
    %v807 = vlog2.pop %v806
    %v808 = vmul.f32 %v807, 0.6931472
    %v809 = vmul.f32 -0.5, %v805
    %v810 = vadd.f32 %v809, 1.0
    %v811 = vmul.f32 %v810, %v805
    %v812 = vand.u32 2147483647, %v805
    %vm813 = vcmp.lt.f32.partialorder %v812, 0.0004427343
    %v814 = vsel %vm813, %v811, %v808
    %v815 = vadd.f32 %v799, %v814
    %v816 = vsel %vm800, %v801, %v815
    %v817 = vadd.f32 %v816, 1.0
    %v818 = vsel %vm798, %v817, %v793
    %819 = vst [vmem:[#allocation11] sm:$0x3] %v818
    // Predicated region
    $region58: #{tpu_custom_call.1} parent=1 // pred_check
      _
    $region59: #{tpu_custom_call.1} parent=1 // pred_check_branch
      %821 = sbr.rel (0) target = $region61
    $region60: #{tpu_custom_call.1} parent=1 // pred_region
      %s823 = ssub.s32 32, 32
      %824 = vsyncadd [#allocation4], %s823
      %s826 = sshll.u32 [#allocation11], 4
      %s827 = int_to_ptr.vmem [resolvable:$true] %s826
      %829 = dma.vmem_to_hbm [thread:$0]  %s827, 32, %s9, [#allocation4]
    $region61: #{tpu_custom_call.1} parent=1 // pred_fallthru
      _
    // Predicated region
    $region62: #{tpu_custom_call.1} parent=1 // pred_check
      _
    $region63: #{tpu_custom_call.1} parent=1 // pred_check_branch
      %831 = sbr.rel (0) target = $region65
    $region64: #{tpu_custom_call.1} parent=1 // pred_region
      %832 = dma.done [#allocation4], 32
    $region65: #{tpu_custom_call.1} parent=1 // pred_fallthru
      _
    %833 = vsyncpa [#allocation3], 1
    %834 = vsyncpa [#allocation6], 1
    %835 = vsyncpa [#allocation9], 1
    %836 = vsyncpa [#allocation4], 1

</llo_original>
